<compile_context>
chip_gen: v7x
topology: tpu7x:2x2x1
jax: 0.10.0
libtpu: 0.0.40
codegen_flags: <defaults>
</compile_context>

<pallas_src>
import functools

import jax
import jax.numpy as jnp
from jax import lax
from jax.experimental import pallas as pl
from jax.experimental.pallas import tpu as pltpu

C_IN = 10     # nn.Conv2d(10, 10, 3)
C_OUT = 10
K_CONV = 3    # conv kernel 3x3, stride 1, no padding
K_POOL = 3    # nn.MaxPool2d(3): kernel 3, stride 3, no padding


def _activate(y, act, a_ref):
    """Fused activation. `act` is a static Python string; PReLU slope is an SMEM scalar."""
    if act == "relu":
        return jnp.maximum(y, 0.0)
    if act == "prelu":
        alpha = a_ref[0, 0]
        return jnp.where(y >= 0.0, y, alpha * y)
    raise KeyError(act)


# ---------------------------------------------------------------------------
# conv + activation
# ---------------------------------------------------------------------------
def _conv_act_kernel(x_ref, w_ref, b_ref, a_ref, o_ref, *, act, w, m):
    # x_ref: (1, H*W + K-1, C_IN)  one flattened, row-padded NHWC image
    # w_ref: (C_OUT, K*K*C_IN)     weights, columns ordered (kh, kw, cin)
    # b_ref: (C_OUT, 1)            bias
    # a_ref: (1, 1) in SMEM        PReLU slope
    # o_ref: (1, C_OUT, OH*W)      channels-major output; columns with
    #                              ow >= OW are junk and sliced off in the wrapper.
    #
    # im2col: output row r = oh*W + ow needs x_flat[r + kh*W + kw] for tap
    # (kh, kw), i.e. a CONTIGUOUS slice of length M = OH*W per tap.
    cols = []
    for kh in range(K_CONV):
        for kw in range(K_CONV):
            s = kh * w + kw
            cols.append(x_ref[0, s:s + m, :])          # (M, C_IN), static slice
    patches = jnp.concatenate(cols, axis=-1)           # (M, K*K*C_IN)

    # Single MXU matmul (contract both minor dims, "NT" form) -> (C_OUT, M):
    # K grows 10 -> 90 and the result is already channels-major.
    y = lax.dot_general(
        w_ref[...], patches,
        dimension_numbers=(((1,), (1,)), ((), ())),
        preferred_element_type=jnp.float32)            # (C_OUT, M)
    y = y + b_ref[...]                                 # bias, broadcast along lanes
    y = _activate(y, act, a_ref)
    o_ref[0] = y.astype(o_ref.dtype)                   # one lane-dense store


def _make_conv_call(n, h, w, act):
    oh = h - K_CONV + 1
    m = oh * w                        # full-width im2col rows (junk cols sliced later)
    hw_pad = h * w + (K_CONV - 1)     # flattened image + (K-1) pad rows
    kernel = functools.partial(_conv_act_kernel, act=act, w=w, m=m)
    return pl.pallas_call(
        kernel,
        out_shape=jax.ShapeDtypeStruct((n, C_OUT, m), jnp.float32),
        grid=(n,),
        in_specs=[
            pl.BlockSpec((1, hw_pad, C_IN), lambda i: (i, 0, 0)),
            pl.BlockSpec((C_OUT, K_CONV * K_CONV * C_IN), lambda i: (0, 0)),
            pl.BlockSpec((C_OUT, 1), lambda i: (0, 0)),
            pl.BlockSpec(memory_space=pltpu.MemorySpace.SMEM),  # PReLU slope scalar
        ],
        out_specs=pl.BlockSpec((1, C_OUT, m), lambda i: (i, 0, 0)),
        compiler_params=pltpu.CompilerParams(dimension_semantics=("parallel",)),
    )


# ---------------------------------------------------------------------------
# max-pool + activation
# ---------------------------------------------------------------------------
def _pool_act_kernel(x_ref, a_ref, o_ref, *, act, oh_n, ow_n):
    # x_ref: (1, H, W, C); a_ref: (1, 1) SMEM; o_ref: (1, OH, OW, C)
    xr = x_ref[0, :K_POOL * oh_n]                               # (3*OH, W, C)
    xr = xr.reshape(oh_n, K_POOL, xr.shape[1], xr.shape[2])     # leading-dim split
    rmax = jnp.maximum(jnp.maximum(xr[:, 0], xr[:, 1]), xr[:, 2])   # (OH, W, C)
    cols = []
    for j in range(ow_n):                                       # 2 vmax per column
        w0 = rmax[:, K_POOL * j:K_POOL * j + 1, :]
        w1 = rmax[:, K_POOL * j + 1:K_POOL * j + 2, :]
        w2 = rmax[:, K_POOL * j + 2:K_POOL * j + 3, :]
        cols.append(jnp.maximum(jnp.maximum(w0, w1), w2))       # (OH, 1, C)
    y = jnp.concatenate(cols, axis=1)                           # (OH, OW, C)
    y = _activate(y, act, a_ref)
    o_ref[0] = y.astype(o_ref.dtype)                            # single store


def _make_pool_call(n, h, w, act):
    oh = (h - K_POOL) // K_POOL + 1
    ow = (w - K_POOL) // K_POOL + 1
    kernel = functools.partial(_pool_act_kernel, act=act, oh_n=oh, ow_n=ow)
    return pl.pallas_call(
        kernel,
        out_shape=jax.ShapeDtypeStruct((n, oh, ow, C_IN), jnp.float32),
        grid=(n,),
        in_specs=[
            pl.BlockSpec((1, h, w, C_IN), lambda i: (i, 0, 0, 0)),
            pl.BlockSpec(memory_space=pltpu.MemorySpace.SMEM),  # PReLU slope scalar
        ],
        out_specs=pl.BlockSpec((1, oh, ow, C_IN), lambda i: (i, 0, 0, 0)),
        compiler_params=pltpu.CompilerParams(dimension_semantics=("parallel",)),
    )


# ---------------------------------------------------------------------------
# wrapper (ModuleDict.forward equivalent, NCHW in / NCHW out)
# ---------------------------------------------------------------------------
def module_dict_forward(x_nchw, params, choice, act):
    n, c, h, w = x_nchw.shape
    assert c == C_IN
    alpha = params["prelu_a"].reshape(1, 1)
    if choice == "conv":
        oh, ow = h - K_CONV + 1, w - K_CONV + 1
        # NCHW -> flattened NHWC rows, padded by K-1 rows so all nine im2col
        # slices are in-bounds (the pad only feeds junk columns ow >= OW).
        x_flat = jnp.transpose(x_nchw, (0, 2, 3, 1)).reshape(n, h * w, C_IN)
        x_flat = jnp.pad(x_flat, ((0, 0), (0, K_CONV - 1), (0, 0)))
        out = _make_conv_call(n, h, w, act)(
            x_flat, params["conv_w_2d"], params["conv_b_col"], alpha)
        # (N, C_OUT, OH*W) is already channels-major: reshape + drop junk columns.
        return out.reshape(n, C_OUT, oh, w)[:, :, :, :ow]
    elif choice == "pool":
        x_nhwc = jnp.transpose(x_nchw, (0, 2, 3, 1))
        y = _make_pool_call(n, h, w, act)(x_nhwc, alpha)
        return jnp.transpose(y, (0, 3, 1, 2))
    raise KeyError(choice)


def _ref_forward(x_nchw, params, choice, act):
    """Pure-JAX reference matching PyTorch semantics (for verification)."""
    if choice == "conv":
        y = jax.lax.conv_general_dilated(
            x_nchw, params["conv_w_oihw"], window_strides=(1, 1),
            padding="VALID", dimension_numbers=("NCHW", "OIHW", "NCHW"))
        y = y + params["conv_b"][None, :, None, None]
    else:
        y = jax.lax.reduce_window(
            x_nchw, -jnp.inf, jax.lax.max,
            window_dimensions=(1, 1, K_POOL, K_POOL),
            window_strides=(1, 1, K_POOL, K_POOL),
            padding="VALID")
    if act == "relu":
        return jnp.maximum(y, 0.0)
    a = params["prelu_a"][0]
    return jnp.where(y >= 0.0, y, a * y)


if __name__ == "__main__":
    key = jax.random.PRNGKey(0)
    k_w, k_b, k_x = jax.random.split(key, 3)

    # Deterministic synthetic parameters (shapes from the module's __init__).
    conv_w_oihw = 0.1 * jax.random.normal(k_w, (C_OUT, C_IN, K_CONV, K_CONV), jnp.float32)
    conv_b = 0.1 * jax.random.normal(k_b, (C_OUT,), jnp.float32)
    prelu_a = jnp.array([0.25], dtype=jnp.float32)  # nn.PReLU() default init

    params = {
        "conv_w_oihw": conv_w_oihw,
        # (C_OUT, K*K*C_IN) with columns ordered (kh, kw, cin), matching the
        # kernel's im2col concat order.
        "conv_w_2d": jnp.transpose(conv_w_oihw, (0, 2, 3, 1)).reshape(
            C_OUT, K_CONV * K_CONV * C_IN),
        "conv_b": conv_b,
        "conv_b_col": conv_b.reshape(C_OUT, 1),
        "prelu_a": prelu_a,
    }

    # Small NCHW input consistent with Conv2d(10, 10, 3).
    x = jax.random.normal(k_x, (2, C_IN, 16, 16), jnp.float32)

    ok = True
    for choice in ("conv", "pool"):
        for act in ("relu", "prelu"):
            out = module_dict_forward(x, params, choice, act)
            out = jax.block_until_ready(out)
            ref = _ref_forward(x, params, choice, act)
            if out.shape != ref.shape or not jnp.allclose(out, ref, atol=1e-4, rtol=1e-4):
                ok = False
                print(f"MISMATCH for choice={choice} act={act}: "
                      f"max_err={float(jnp.max(jnp.abs(out - ref)))}")

    if ok:
        print("KERNEL_OK")
</pallas_src>

<mosaic_0001>
module attributes {stable_mosaic.version = 11 : i64} {
  func.func @_conv_act_kernel(%arg0: i32, %arg1: memref<1x258x10xf32, #tpu.memory_space<vmem>>, %arg2: memref<10x90xf32, #tpu.memory_space<vmem>>, %arg3: memref<10x1xf32, #tpu.memory_space<vmem>>, %arg4: memref<1x1xf32, #tpu.memory_space<smem>>, %arg5: memref<1x10x224xf32, #tpu.memory_space<vmem>>) attributes {dimension_semantics = [#tpu.dimension_semantics<parallel>], iteration_bounds = array<i64: 2>, scalar_prefetch = 0 : i64, scratch_operands = 0 : i64, tpu.core_type = #tpu.core_type<tc>, window_params = [{transform_indices = @transform_0, window_bounds = array<i64: 1, 258, 10>}, {pipeline_mode = #tpu.pipeline_mode<synchronous>, transform_indices = @transform_1, window_bounds = array<i64: 10, 90>}, {pipeline_mode = #tpu.pipeline_mode<synchronous>, transform_indices = @transform_2, window_bounds = array<i64: 10, 1>}, {transform_indices = @transform_3, window_bounds = array<i64: 1, 1>}, {transform_indices = @transform_4, window_bounds = array<i64: 1, 10, 224>}]} {
    %c0 = arith.constant 0 : index
    %c0_0 = arith.constant 0 : index
    %c0_1 = arith.constant 0 : index
    %0 = vector.load %arg1[%c0, %c0_0, %c0_1] : memref<1x258x10xf32, #tpu.memory_space<vmem>>, vector<1x224x10xf32>
    %1 = vector.shape_cast %0 : vector<1x224x10xf32> to vector<224x10xf32>
    %c0_2 = arith.constant 0 : index
    %c1 = arith.constant 1 : index
    %c0_3 = arith.constant 0 : index
    %2 = vector.load %arg1[%c0_2, %c1, %c0_3] : memref<1x258x10xf32, #tpu.memory_space<vmem>>, vector<1x224x10xf32>
    %3 = vector.shape_cast %2 : vector<1x224x10xf32> to vector<224x10xf32>
    %c0_4 = arith.constant 0 : index
    %c2 = arith.constant 2 : index
    %c0_5 = arith.constant 0 : index
    %4 = vector.load %arg1[%c0_4, %c2, %c0_5] : memref<1x258x10xf32, #tpu.memory_space<vmem>>, vector<1x224x10xf32>
    %5 = vector.shape_cast %4 : vector<1x224x10xf32> to vector<224x10xf32>
    %c0_6 = arith.constant 0 : index
    %c16 = arith.constant 16 : index
    %c0_7 = arith.constant 0 : index
    %6 = vector.load %arg1[%c0_6, %c16, %c0_7] : memref<1x258x10xf32, #tpu.memory_space<vmem>>, vector<1x224x10xf32>
    %7 = vector.shape_cast %6 : vector<1x224x10xf32> to vector<224x10xf32>
    %c0_8 = arith.constant 0 : index
    %c17 = arith.constant 17 : index
    %c0_9 = arith.constant 0 : index
    %8 = vector.load %arg1[%c0_8, %c17, %c0_9] : memref<1x258x10xf32, #tpu.memory_space<vmem>>, vector<1x224x10xf32>
    %9 = vector.shape_cast %8 : vector<1x224x10xf32> to vector<224x10xf32>
    %c0_10 = arith.constant 0 : index
    %c18 = arith.constant 18 : index
    %c0_11 = arith.constant 0 : index
    %10 = vector.load %arg1[%c0_10, %c18, %c0_11] : memref<1x258x10xf32, #tpu.memory_space<vmem>>, vector<1x224x10xf32>
    %11 = vector.shape_cast %10 : vector<1x224x10xf32> to vector<224x10xf32>
    %c0_12 = arith.constant 0 : index
    %c32 = arith.constant 32 : index
    %c0_13 = arith.constant 0 : index
    %12 = vector.load %arg1[%c0_12, %c32, %c0_13] : memref<1x258x10xf32, #tpu.memory_space<vmem>>, vector<1x224x10xf32>
    %13 = vector.shape_cast %12 : vector<1x224x10xf32> to vector<224x10xf32>
    %c0_14 = arith.constant 0 : index
    %c33 = arith.constant 33 : index
    %c0_15 = arith.constant 0 : index
    %14 = vector.load %arg1[%c0_14, %c33, %c0_15] : memref<1x258x10xf32, #tpu.memory_space<vmem>>, vector<1x224x10xf32>
    %15 = vector.shape_cast %14 : vector<1x224x10xf32> to vector<224x10xf32>
    %c0_16 = arith.constant 0 : index
    %c34 = arith.constant 34 : index
    %c0_17 = arith.constant 0 : index
    %16 = vector.load %arg1[%c0_16, %c34, %c0_17] : memref<1x258x10xf32, #tpu.memory_space<vmem>>, vector<1x224x10xf32>
    %17 = vector.shape_cast %16 : vector<1x224x10xf32> to vector<224x10xf32>
    %18 = tpu.concatenate %1, %3, %5, %7, %9, %11, %13, %15, %17 in 1 : vector<224x10xf32>, vector<224x10xf32>, vector<224x10xf32>, vector<224x10xf32>, vector<224x10xf32>, vector<224x10xf32>, vector<224x10xf32>, vector<224x10xf32>, vector<224x10xf32> -> vector<224x90xf32>
    %c0_18 = arith.constant 0 : index
    %c0_19 = arith.constant 0 : index
    %19 = vector.load %arg2[%c0_18, %c0_19] : memref<10x90xf32, #tpu.memory_space<vmem>>, vector<10x90xf32>
    %cst = arith.constant dense<0.000000e+00> : vector<10x224xf32>
    %20 = tpu.matmul %19, %18, %cst {dimension_numbers = #tpu.dot_dimension_numbers<[1], [1], [0], [0], [0, 0, 1, 0], [], []>} : vector<10x90xf32>, vector<224x90xf32>, vector<10x224xf32> -> vector<10x224xf32>
    %c0_20 = arith.constant 0 : index
    %c0_21 = arith.constant 0 : index
    %21 = vector.load %arg3[%c0_20, %c0_21] : memref<10x1xf32, #tpu.memory_space<vmem>>, vector<10x1xf32>
    %22 = vector.broadcast %21 : vector<10x1xf32> to vector<10x224xf32>
    %23 = arith.addf %20, %22 : vector<10x224xf32>
    %cst_22 = arith.constant 0.000000e+00 : f32
    %24 = vector.broadcast %cst_22 : f32 to vector<10x224xf32>
    %25 = arith.maximumf %23, %24 : vector<10x224xf32>
    %c0_23 = arith.constant 0 : index
    %c0_24 = arith.constant 0 : index
    %c0_25 = arith.constant 0 : index
    %26 = vector.load %arg5[%c0_23, %c0_24, %c0_25] : memref<1x10x224xf32, #tpu.memory_space<vmem>>, vector<1x10x224xf32>
    %27 = vector.shape_cast %26 : vector<1x10x224xf32> to vector<10x224xf32>
    %28 = vector.shape_cast %25 : vector<10x224xf32> to vector<1x10x224xf32>
    tpu.vector_store %arg5[%c0_23, %c0_24, %c0_25], %28 {strides = array<i32>} : memref<1x10x224xf32, #tpu.memory_space<vmem>>, vector<1x10x224xf32>,
    return
  }
  func.func @transform_0(%arg0: i32) -> (i32, i32, i32) {
    %c0_i32 = arith.constant 0 : i32
    %c0_i32_0 = arith.constant 0 : i32
    %c0_i32_1 = arith.constant 0 : i32
    return %arg0, %c0_i32, %c0_i32_0 : i32, i32, i32
  }
  func.func @transform_1(%arg0: i32) -> (i32, i32) {
    %c0_i32 = arith.constant 0 : i32
    %c0_i32_0 = arith.constant 0 : i32
    %c0_i32_1 = arith.constant 0 : i32
    return %c0_i32, %c0_i32_0 : i32, i32
  }
  func.func @transform_2(%arg0: i32) -> (i32, i32) {
    %c0_i32 = arith.constant 0 : i32
    %c0_i32_0 = arith.constant 0 : i32
    %c0_i32_1 = arith.constant 0 : i32
    return %c0_i32, %c0_i32_0 : i32, i32
  }
  func.func @transform_3(%arg0: i32) -> (i32, i32) {
    %c0_i32 = arith.constant 0 : i32
    %c0_i32_0 = arith.constant 0 : i32
    %c0_i32_1 = arith.constant 0 : i32
    return %c0_i32, %c0_i32_0 : i32, i32
  }
  func.func @transform_4(%arg0: i32) -> (i32, i32, i32) {
    %c0_i32 = arith.constant 0 : i32
    %c0_i32_0 = arith.constant 0 : i32
    %c0_i32_1 = arith.constant 0 : i32
    return %arg0, %c0_i32, %c0_i32_0 : i32, i32, i32
  }
}

</mosaic_0001>

<llo_original>
// kernel: tpu_custom_call.1
$region0: #{tpu_custom_call.1}
  #allocation0 [shape = 'u32[]', space=smem, size = 0x4, offset = 0x4, fixed_abs, tag = 'smem constant byte address 0x4 - core index']
  #allocation1 [shape = 'u32[144,128]{1,0:T(1,128)}', space=vmem, size = 0x12000, scoped, tag = 'internal scratch']
  #allocation2 [shape = 'f32[1,1]{1,0:T(1,128)S(6)}', space=smem, size = 0x200, scoped, tag = 'scoped memory for tpu_custom_call.1']
  %s0 = inlined_call_operand.vmem [shape: f32[2,258,10], index: 0, kind: input, shape index: {}]
  %s1 = inlined_call_operand.vmem [shape: f32[10,90], index: 1, kind: input, shape index: {}]
  %s2 = inlined_call_operand.vmem [shape: f32[10,1], index: 2, kind: input, shape index: {}]
  %s3 = inlined_call_operand.<no memory space> [shape: f32[1,1], index: 3, kind: input, shape index: {}]
  %s4 = inlined_call_operand.vmem [shape: f32[2,10,224], index: 4, kind: output, shape index: {}]
  %s5 = sld [smem:[#allocation0]]
  $region49: #{tpu_custom_call.1} parent=0
    _
  %s7 = ssub.s32 1, %s5
  %s8 = scalar_select 0, %s7, %s5
  %9 = sst [smem:[#allocation2]] %s3
  loop: start=0, step=1, limit=4
  $region2: #{tpu_custom_call.1} parent=0 // loop_pre_header
    _
  $region3: #{tpu_custom_call.1} parent=0 // loop_header
    %s11 = sphi 0, %s15
    %p12 = scmp.ge.s32.totalorder %s11, 4
    %s21 = sphi 0, %s23
    %s24 = sphi 0, %s21
    %s25 = sphi 0, %s24
    %s41 = sphi 0, %s25
    %s45 = sphi 0, %s45
    %s47 = sphi 0, %s45
    %s48 = sphi 0, %s47
    %s62 = sphi 0, %s48
    %s66 = sphi 0, %s66
    %s68 = sphi 0, %s66
    %s69 = sphi 0, %s68
    %s83 = sphi 0, %s69
    %s87 = sphi 0, %s87
    %s89 = sphi 0, %s87
    %s90 = sphi 0, %s89
    %s104 = sphi 0, %s90
    %s110 = sphi 0, %s112
    %s113 = sphi 0, %s110
    %s114 = sphi 0, %s113
    %s130 = sphi 0, %s114
  $region4: #{tpu_custom_call.1} parent=0 // loop_header_branch
    %14 = sbr.rel (%p12) target = $region8
  $region5: #{tpu_custom_call.1} parent=0 // loop_body
    %s16 = ssub.s32 %s11, 1
    %s17 = ssub.s32 %s11, 2
    %s18 = sadd.s32 %s11, 1
    %s19 = ssub.s32 %s11, %s18
    %p20 = scmp.eq.s32.totalorder %s19, 0
    %s22 = sadd.s32 %s21, 1
    %s23 = scalar_select %p20, %s21, %s22
    %p26 = pneg %p20
    %p27 = scmp.eq.s32.totalorder %s11, 1
    %p28 = por %p26, %p27
    %p29 = scmp.ne.s32.totalorder %s21, %s24
    %p30 = scmp.eq.s32.totalorder %s11, 0
    %p31 = por %p29, %p30
    %p32 = scmp.ne.s32.totalorder %s21, %s24
    %p33 = scmp.eq.s32.totalorder %s16, 1
    %p34 = por %p32, %p33
    %p35 = scmp.ne.s32.totalorder %s24, %s25
    %p36 = scmp.eq.s32.totalorder %s16, 0
    %p37 = por %p35, %p36
    %p38 = scmp.ne.s32.totalorder %s24, %s25
    %p39 = scmp.eq.s32.totalorder %s17, 1
    %p40 = por %p38, %p39
    %p42 = scmp.ne.s32.totalorder %s25, %s41
    %p43 = scmp.eq.s32.totalorder %s17, 0
    %p44 = por %p42, %p43
    %s46 = sadd.s32 %s45, 1
    %p49 = scmp.eq.s32.totalorder %s11, 1
    %p50 = scmp.ne.s32.totalorder %s45, %s47
    %p51 = scmp.eq.s32.totalorder %s11, 0
    %p52 = por %p50, %p51
    %p53 = scmp.ne.s32.totalorder %s45, %s47
    %p54 = scmp.eq.s32.totalorder %s16, 1
    %p55 = por %p53, %p54
    %p56 = scmp.ne.s32.totalorder %s47, %s48
    %p57 = scmp.eq.s32.totalorder %s16, 0
    %p58 = por %p56, %p57
    %p59 = scmp.ne.s32.totalorder %s47, %s48
    %p60 = scmp.eq.s32.totalorder %s17, 1
    %p61 = por %p59, %p60
    %p63 = scmp.ne.s32.totalorder %s48, %s62
    %p64 = scmp.eq.s32.totalorder %s17, 0
    %p65 = por %p63, %p64
    %s67 = sadd.s32 %s66, 1
    %p70 = scmp.eq.s32.totalorder %s11, 1
    %p71 = scmp.ne.s32.totalorder %s66, %s68
    %p72 = scmp.eq.s32.totalorder %s11, 0
    %p73 = por %p71, %p72
    %p74 = scmp.ne.s32.totalorder %s66, %s68
    %p75 = scmp.eq.s32.totalorder %s16, 1
    %p76 = por %p74, %p75
    %p77 = scmp.ne.s32.totalorder %s68, %s69
    %p78 = scmp.eq.s32.totalorder %s16, 0
    %p79 = por %p77, %p78
    %p80 = scmp.ne.s32.totalorder %s68, %s69
    %p81 = scmp.eq.s32.totalorder %s17, 1
    %p82 = por %p80, %p81
    %p84 = scmp.ne.s32.totalorder %s69, %s83
    %p85 = scmp.eq.s32.totalorder %s17, 0
    %p86 = por %p84, %p85
    %s88 = sadd.s32 %s87, 1
    %p91 = scmp.eq.s32.totalorder %s11, 1
    %p92 = scmp.ne.s32.totalorder %s87, %s89
    %p93 = scmp.eq.s32.totalorder %s11, 0
    %p94 = por %p92, %p93
    %p95 = scmp.ne.s32.totalorder %s87, %s89
    %p96 = scmp.eq.s32.totalorder %s16, 1
    %p97 = por %p95, %p96
    %p98 = scmp.ne.s32.totalorder %s89, %s90
    %p99 = scmp.eq.s32.totalorder %s16, 0
    %p100 = por %p98, %p99
    %p101 = scmp.ne.s32.totalorder %s89, %s90
    %p102 = scmp.eq.s32.totalorder %s17, 1
    %p103 = por %p101, %p102
    %p105 = scmp.ne.s32.totalorder %s90, %s104
    %p106 = scmp.eq.s32.totalorder %s17, 0
    %p107 = por %p105, %p106
    %s108 = ssub.s32 %s11, %s18
    %p109 = scmp.eq.s32.totalorder %s108, 0
    %s111 = sadd.s32 %s110, 1
    %s112 = scalar_select %p109, %s110, %s111
    %p115 = pneg %p109
    %p116 = scmp.eq.s32.totalorder %s11, 1
    %p117 = por %p115, %p116
    %p118 = scmp.ne.s32.totalorder %s110, %s113
    %p119 = scmp.eq.s32.totalorder %s11, 0
    %p120 = por %p118, %p119
    %p121 = scmp.ne.s32.totalorder %s110, %s113
    %p122 = scmp.eq.s32.totalorder %s16, 1
    %p123 = por %p121, %p122
    %p124 = scmp.ne.s32.totalorder %s113, %s114
    %p125 = scmp.eq.s32.totalorder %s16, 0
    %p126 = por %p124, %p125
    %p127 = scmp.ne.s32.totalorder %s113, %s114
    %p128 = scmp.eq.s32.totalorder %s17, 1
    %p129 = por %p127, %p128
    %p131 = scmp.ne.s32.totalorder %s114, %s130
    %p132 = scmp.eq.s32.totalorder %s17, 0
    %p133 = por %p131, %p132
    %p134 = scmp.le.s32.totalorder 1, %s11
    %p135 = scmp.lt.s32.totalorder %s11, 3
    %p136 = pnand %p134, %p135
    %p137 = pneg %p136
    // Predicated region
    $region9: #{tpu_custom_call.1} parent=5 // pred_check
      _
    $region10: #{tpu_custom_call.1} parent=5 // pred_check_branch
      %139 = sbr.rel (%p136) target = $region12
    $region11: #{tpu_custom_call.1} parent=5 // pred_region
      %s140 = ssub.s32 %s11, 1
      // Predicated region
      $region13: #{tpu_custom_call.1} parent=11 // pred_check
        %p141 = pneg %p58
      $region14: #{tpu_custom_call.1} parent=11 // pred_check_branch
        %143 = sbr.rel (%p141) target = $region16
      $region15: #{tpu_custom_call.1} parent=11 // pred_region
        _
      $region16: #{tpu_custom_call.1} parent=11 // pred_fallthru
        _
      // Predicated region
      $region17: #{tpu_custom_call.1} parent=11 // pred_check
        %p144 = pneg %p79
      $region18: #{tpu_custom_call.1} parent=11 // pred_check_branch
        %146 = sbr.rel (%p144) target = $region20
      $region19: #{tpu_custom_call.1} parent=11 // pred_region
        _
      $region20: #{tpu_custom_call.1} parent=11 // pred_fallthru
        _
      // Predicated region
      $region21: #{tpu_custom_call.1} parent=11 // pred_check
        %p147 = pneg %p100
      $region22: #{tpu_custom_call.1} parent=11 // pred_check_branch
        %149 = sbr.rel (%p147) target = $region24
      $region23: #{tpu_custom_call.1} parent=11 // pred_region
        _
      $region24: #{tpu_custom_call.1} parent=11 // pred_fallthru
        _
    $region12: #{tpu_custom_call.1} parent=5 // pred_fallthru
      _
    %p150 = scmp.lt.s32.totalorder %s11, 2
    // Predicated region
    $region25: #{tpu_custom_call.1} parent=5 // pred_check
      %p151 = pneg %p150
    $region26: #{tpu_custom_call.1} parent=5 // pred_check_branch
      %153 = sbr.rel (%p151) target = $region28
    $region27: #{tpu_custom_call.1} parent=5 // pred_region
      // Predicated region
      $region29: #{tpu_custom_call.1} parent=27 // pred_check
        %p154 = pneg %p31
      $region30: #{tpu_custom_call.1} parent=27 // pred_check_branch
        %156 = sbr.rel (%p154) target = $region32
      $region31: #{tpu_custom_call.1} parent=27 // pred_region
        %p157 = scmp.lt.s32.totalorder %s11, 1
        %s158 = scalar_select %p157, %s11, 1
        %s159 = smul.addr %s158, 33
        %s160 = smul.addr %s159, 8
        %s161 = scalar_lea.vmem %s0, %s160
      $region32: #{tpu_custom_call.1} parent=27 // pred_fallthru
        _
    $region28: #{tpu_custom_call.1} parent=5 // pred_fallthru
      _
    %p162 = scmp.le.s32.totalorder 1, %s11
    %p163 = scmp.lt.s32.totalorder %s11, 3
    %p164 = pnand %p162, %p163
    %p165 = pneg %p164
    // Predicated region
    $region33: #{tpu_custom_call.1} parent=5 // pred_check
      _
    $region34: #{tpu_custom_call.1} parent=5 // pred_check_branch
      %167 = sbr.rel (%p164) target = $region36
    $region35: #{tpu_custom_call.1} parent=5 // pred_region
      %s168 = ssub.s32 %s11, 1
      %p169 = scmp.lt.s32.totalorder %s16, 1
      %s170 = scalar_select %p169, %s16, 1
      %s171 = smul.addr %s170, 33
      %s172 = smul.addr %s171, 8
      %s173 = scalar_lea.vmem %s0, %s172
      %p174 = pneg %p37
      %p175 = pneg %p34
      %p176 = pneg %p58
      %p177 = pneg %p55
      %p178 = pneg %p79
      %p179 = pneg %p76
      %p180 = pneg %p100
      %p181 = pneg %p97
      %p182 = pneg %p126
      %p183 = pneg %p123
      %p184 = scmp.lt.s32.totalorder %s16, 1
      %s185 = scalar_select %p184, %s16, 1
      %s186 = smul.addr %s185, 4
      %s187 = smul.addr %s186, 8
      %s188 = scalar_lea.vmem %s4, %s187
      %p189 = scmp.lt.s32.totalorder %s16, 1
      %s190 = scalar_select %p189, %s16, 1
      %s191 = smul.addr %s190, 33
      %s192 = smul.addr %s191, 8
      %s193 = scalar_lea.vmem %s0, %s192
      %p194 = scmp.lt.s32.totalorder %s16, 1
      %s195 = scalar_select %p194, %s16, 1
      %s196 = smul.addr %s195, 4
      %s197 = smul.addr %s196, 8
      %s198 = scalar_lea.vmem %s4, %s197
      %v199 = vld [vmem:[%s193] sm:$0xff]
      %v200 = vld [vmem:[%s193 + $0x8] sm:$0xff]
      %v201 = vld [vmem:[%s193 + $0x10] sm:$0xff]
      %v202 = vld [vmem:[%s193 + $0x18] sm:$0xff]
      %v203 = vld [vmem:[%s193 + $0x20] sm:$0xff]
      %v204 = vld [vmem:[%s193 + $0x28] sm:$0xff]
      %v205 = vld [vmem:[%s193 + $0x30] sm:$0xff]
      %v206 = vld [vmem:[%s193 + $0x38] sm:$0xff]
      %v207 = vld [vmem:[%s193 + $0x40] sm:$0xff]
      %v208 = vld [vmem:[%s193 + $0x48] sm:$0xff]
      %v209 = vld [vmem:[%s193 + $0x50] sm:$0xff]
      %v210 = vld [vmem:[%s193 + $0x58] sm:$0xff]
      %v211 = vld [vmem:[%s193 + $0x60] sm:$0xff]
      %v212 = vld [vmem:[%s193 + $0x68] sm:$0xff]
      %v213 = vld [vmem:[%s193 + $0x70] sm:$0xff]
      %v214 = vld [vmem:[%s193 + $0x78] sm:$0xff]
      %v215 = vld [vmem:[%s193 + $0x80] sm:$0xff]
      %v216 = vld [vmem:[%s193 + $0x88] sm:$0xff]
      %v217 = vld [vmem:[%s193 + $0x90] sm:$0xff]
      %v218 = vld [vmem:[%s193 + $0x98] sm:$0xff]
      %v219 = vld [vmem:[%s193 + $0xa0] sm:$0xff]
      %v220 = vld [vmem:[%s193 + $0xa8] sm:$0xff]
      %v221 = vld [vmem:[%s193 + $0xb0] sm:$0xff]
      %v222 = vld [vmem:[%s193 + $0xb8] sm:$0xff]
      %v223 = vld [vmem:[%s193 + $0xc0] sm:$0xff]
      %v224 = vld [vmem:[%s193 + $0xc8] sm:$0xff]
      %v225 = vld [vmem:[%s193 + $0xd0] sm:$0xff]
      %v226 = vld [vmem:[%s193 + $0xd8] sm:$0xff]
      %v227 = vld [vmem:[%s193 + $0x1] sm:$0xff]
      %v228 = vld [vmem:[%s193 + $0x9] sm:$0xff]
      %v229 = vld [vmem:[%s193 + $0x11] sm:$0xff]
      %v230 = vld [vmem:[%s193 + $0x19] sm:$0xff]
      %v231 = vld [vmem:[%s193 + $0x21] sm:$0xff]
      %v232 = vld [vmem:[%s193 + $0x29] sm:$0xff]
      %v233 = vld [vmem:[%s193 + $0x31] sm:$0xff]
      %v234 = vld [vmem:[%s193 + $0x39] sm:$0xff]
      %v235 = vld [vmem:[%s193 + $0x41] sm:$0xff]
      %v236 = vld [vmem:[%s193 + $0x49] sm:$0xff]
      %v237 = vld [vmem:[%s193 + $0x51] sm:$0xff]
      %v238 = vld [vmem:[%s193 + $0x59] sm:$0xff]
      %v239 = vld [vmem:[%s193 + $0x61] sm:$0xff]
      %v240 = vld [vmem:[%s193 + $0x69] sm:$0xff]
      %v241 = vld [vmem:[%s193 + $0x71] sm:$0xff]
      %v242 = vld [vmem:[%s193 + $0x79] sm:$0xff]
      %v243 = vld [vmem:[%s193 + $0x81] sm:$0xff]
      %v244 = vld [vmem:[%s193 + $0x89] sm:$0xff]
      %v245 = vld [vmem:[%s193 + $0x91] sm:$0xff]
      %v246 = vld [vmem:[%s193 + $0x99] sm:$0xff]
      %v247 = vld [vmem:[%s193 + $0xa1] sm:$0xff]
      %v248 = vld [vmem:[%s193 + $0xa9] sm:$0xff]
      %v249 = vld [vmem:[%s193 + $0xb1] sm:$0xff]
      %v250 = vld [vmem:[%s193 + $0xb9] sm:$0xff]
      %v251 = vld [vmem:[%s193 + $0xc1] sm:$0xff]
      %v252 = vld [vmem:[%s193 + $0xc9] sm:$0xff]
      %v253 = vld [vmem:[%s193 + $0xd1] sm:$0xff]
      %v254 = vld [vmem:[%s193 + $0xd9] sm:$0xff]
      %v255 = vld [vmem:[%s193 + $0x2] sm:$0xff]
      %v256 = vld [vmem:[%s193 + $0xa] sm:$0xff]
      %v257 = vld [vmem:[%s193 + $0x12] sm:$0xff]
      %v258 = vld [vmem:[%s193 + $0x1a] sm:$0xff]
      %v259 = vld [vmem:[%s193 + $0x22] sm:$0xff]
      %v260 = vld [vmem:[%s193 + $0x2a] sm:$0xff]
      %v261 = vld [vmem:[%s193 + $0x32] sm:$0xff]
      %v262 = vld [vmem:[%s193 + $0x3a] sm:$0xff]
      %v263 = vld [vmem:[%s193 + $0x42] sm:$0xff]
      %v264 = vld [vmem:[%s193 + $0x4a] sm:$0xff]
      %v265 = vld [vmem:[%s193 + $0x52] sm:$0xff]
      %v266 = vld [vmem:[%s193 + $0x5a] sm:$0xff]
      %v267 = vld [vmem:[%s193 + $0x62] sm:$0xff]
      %v268 = vld [vmem:[%s193 + $0x6a] sm:$0xff]
      %v269 = vld [vmem:[%s193 + $0x72] sm:$0xff]
      %v270 = vld [vmem:[%s193 + $0x7a] sm:$0xff]
      %v271 = vld [vmem:[%s193 + $0x82] sm:$0xff]
      %v272 = vld [vmem:[%s193 + $0x8a] sm:$0xff]
      %v273 = vld [vmem:[%s193 + $0x92] sm:$0xff]
      %v274 = vld [vmem:[%s193 + $0x9a] sm:$0xff]
      %v275 = vld [vmem:[%s193 + $0xa2] sm:$0xff]
      %v276 = vld [vmem:[%s193 + $0xaa] sm:$0xff]
      %v277 = vld [vmem:[%s193 + $0xb2] sm:$0xff]
      %v278 = vld [vmem:[%s193 + $0xba] sm:$0xff]
      %v279 = vld [vmem:[%s193 + $0xc2] sm:$0xff]
      %v280 = vld [vmem:[%s193 + $0xca] sm:$0xff]
      %v281 = vld [vmem:[%s193 + $0xd2] sm:$0xff]
      %v282 = vld [vmem:[%s193 + $0xda] sm:$0xff]
      %v283 = vld [vmem:[%s193 + $0xe0] sm:$0xff]
      %v284 = vld [vmem:[%s193 + $0xe8] sm:$0xff]
      %v285 = vld [vmem:[%s193 + $0xe1] sm:$0xff]
      %v286 = vld [vmem:[%s193 + $0xe9] sm:$0xff]
      %v287 = vld [vmem:[%s193 + $0xe2] sm:$0xff]
      %v288 = vld [vmem:[%s193 + $0xea] sm:$0xff]
      %v289 = vld [vmem:[%s193 + $0xf0] sm:$0xff]
      %v290 = vld [vmem:[%s193 + $0xf8] sm:$0xff]
      %v291 = vld [vmem:[%s193 + $0xf1] sm:$0xff]
      %v292 = vld [vmem:[%s193 + $0xf9] sm:$0xff]
      %v293 = vld [vmem:[%s193 + $0xf2] sm:$0xff]
      %v294 = vld [vmem:[%s193 + $0xfa] sm:$0xff]
      %323 = vrot.lane.b32.xlu0 %v227, 10
      %v324 = vpop.permute.xlu0 %323
      %325 = vrot.lane.b32.xlu0 %v228, 10
      %v326 = vpop.permute.xlu0 %325
      %327 = vrot.lane.b32.xlu0 %v229, 10
      %v328 = vpop.permute.xlu0 %327
      %329 = vrot.lane.b32.xlu0 %v230, 10
      %v330 = vpop.permute.xlu0 %329
      %331 = vrot.lane.b32.xlu0 %v231, 10
      %v332 = vpop.permute.xlu0 %331
      %333 = vrot.lane.b32.xlu0 %v232, 10
      %v334 = vpop.permute.xlu0 %333
      %335 = vrot.lane.b32.xlu0 %v233, 10
      %v336 = vpop.permute.xlu0 %335
      %337 = vrot.lane.b32.xlu0 %v234, 10
      %v338 = vpop.permute.xlu0 %337
      %339 = vrot.lane.b32.xlu0 %v235, 10
      %v340 = vpop.permute.xlu0 %339
      %341 = vrot.lane.b32.xlu0 %v236, 10
      %v342 = vpop.permute.xlu0 %341
      %343 = vrot.lane.b32.xlu0 %v237, 10
      %v344 = vpop.permute.xlu0 %343
      %345 = vrot.lane.b32.xlu0 %v238, 10
      %v346 = vpop.permute.xlu0 %345
      %347 = vrot.lane.b32.xlu0 %v239, 10
      %v348 = vpop.permute.xlu0 %347
      %349 = vrot.lane.b32.xlu0 %v240, 10
      %v350 = vpop.permute.xlu0 %349
      %351 = vrot.lane.b32.xlu0 %v241, 10
      %v352 = vpop.permute.xlu0 %351
      %353 = vrot.lane.b32.xlu0 %v242, 10
      %v354 = vpop.permute.xlu0 %353
      %355 = vrot.lane.b32.xlu0 %v243, 10
      %v356 = vpop.permute.xlu0 %355
      %357 = vrot.lane.b32.xlu0 %v244, 10
      %v358 = vpop.permute.xlu0 %357
      %359 = vrot.lane.b32.xlu0 %v245, 10
      %v360 = vpop.permute.xlu0 %359
      %361 = vrot.lane.b32.xlu0 %v246, 10
      %v362 = vpop.permute.xlu0 %361
      %363 = vrot.lane.b32.xlu0 %v247, 10
      %v364 = vpop.permute.xlu0 %363
      %365 = vrot.lane.b32.xlu0 %v248, 10
      %v366 = vpop.permute.xlu0 %365
      %367 = vrot.lane.b32.xlu0 %v249, 10
      %v368 = vpop.permute.xlu0 %367
      %369 = vrot.lane.b32.xlu0 %v250, 10
      %v370 = vpop.permute.xlu0 %369
      %371 = vrot.lane.b32.xlu0 %v251, 10
      %v372 = vpop.permute.xlu0 %371
      %373 = vrot.lane.b32.xlu0 %v252, 10
      %v374 = vpop.permute.xlu0 %373
      %375 = vrot.lane.b32.xlu0 %v253, 10
      %v376 = vpop.permute.xlu0 %375
      %377 = vrot.lane.b32.xlu0 %v254, 10
      %v378 = vpop.permute.xlu0 %377
      %435 = vrot.lane.b32.xlu0 %v255, 20
      %v436 = vpop.permute.xlu0 %435
      %437 = vrot.lane.b32.xlu0 %v256, 20
      %v438 = vpop.permute.xlu0 %437
      %439 = vrot.lane.b32.xlu0 %v257, 20
      %v440 = vpop.permute.xlu0 %439
      %441 = vrot.lane.b32.xlu0 %v258, 20
      %v442 = vpop.permute.xlu0 %441
      %443 = vrot.lane.b32.xlu0 %v259, 20
      %v444 = vpop.permute.xlu0 %443
      %445 = vrot.lane.b32.xlu0 %v260, 20
      %v446 = vpop.permute.xlu0 %445
      %447 = vrot.lane.b32.xlu0 %v261, 20
      %v448 = vpop.permute.xlu0 %447
      %449 = vrot.lane.b32.xlu0 %v262, 20
      %v450 = vpop.permute.xlu0 %449
      %451 = vrot.lane.b32.xlu0 %v263, 20
      %v452 = vpop.permute.xlu0 %451
      %453 = vrot.lane.b32.xlu0 %v264, 20
      %v454 = vpop.permute.xlu0 %453
      %455 = vrot.lane.b32.xlu0 %v265, 20
      %v456 = vpop.permute.xlu0 %455
      %457 = vrot.lane.b32.xlu0 %v266, 20
      %v458 = vpop.permute.xlu0 %457
      %459 = vrot.lane.b32.xlu0 %v267, 20
      %v460 = vpop.permute.xlu0 %459
      %461 = vrot.lane.b32.xlu0 %v268, 20
      %v462 = vpop.permute.xlu0 %461
      %463 = vrot.lane.b32.xlu0 %v269, 20
      %v464 = vpop.permute.xlu0 %463
      %465 = vrot.lane.b32.xlu0 %v270, 20
      %v466 = vpop.permute.xlu0 %465
      %467 = vrot.lane.b32.xlu0 %v271, 20
      %v468 = vpop.permute.xlu0 %467
      %469 = vrot.lane.b32.xlu0 %v272, 20
      %v470 = vpop.permute.xlu0 %469
      %471 = vrot.lane.b32.xlu0 %v273, 20
      %v472 = vpop.permute.xlu0 %471
      %473 = vrot.lane.b32.xlu0 %v274, 20
      %v474 = vpop.permute.xlu0 %473
      %475 = vrot.lane.b32.xlu0 %v275, 20
      %v476 = vpop.permute.xlu0 %475
      %477 = vrot.lane.b32.xlu0 %v276, 20
      %v478 = vpop.permute.xlu0 %477
      %479 = vrot.lane.b32.xlu0 %v277, 20
      %v480 = vpop.permute.xlu0 %479
      %481 = vrot.lane.b32.xlu0 %v278, 20
      %v482 = vpop.permute.xlu0 %481
      %483 = vrot.lane.b32.xlu0 %v279, 20
      %v484 = vpop.permute.xlu0 %483
      %485 = vrot.lane.b32.xlu0 %v280, 20
      %v486 = vpop.permute.xlu0 %485
      %487 = vrot.lane.b32.xlu0 %v281, 20
      %v488 = vpop.permute.xlu0 %487
      %489 = vrot.lane.b32.xlu0 %v282, 20
      %v490 = vpop.permute.xlu0 %489
      %547 = vrot.lane.b32.xlu0 %v201, 30
      %v548 = vpop.permute.xlu0 %547
      %549 = vrot.lane.b32.xlu0 %v202, 30
      %v550 = vpop.permute.xlu0 %549
      %551 = vrot.lane.b32.xlu0 %v203, 30
      %v552 = vpop.permute.xlu0 %551
      %553 = vrot.lane.b32.xlu0 %v204, 30
      %v554 = vpop.permute.xlu0 %553
      %555 = vrot.lane.b32.xlu0 %v205, 30
      %v556 = vpop.permute.xlu0 %555
      %557 = vrot.lane.b32.xlu0 %v206, 30
      %v558 = vpop.permute.xlu0 %557
      %559 = vrot.lane.b32.xlu0 %v207, 30
      %v560 = vpop.permute.xlu0 %559
      %561 = vrot.lane.b32.xlu0 %v208, 30
      %v562 = vpop.permute.xlu0 %561
      %563 = vrot.lane.b32.xlu0 %v209, 30
      %v564 = vpop.permute.xlu0 %563
      %565 = vrot.lane.b32.xlu0 %v210, 30
      %v566 = vpop.permute.xlu0 %565
      %567 = vrot.lane.b32.xlu0 %v211, 30
      %v568 = vpop.permute.xlu0 %567
      %569 = vrot.lane.b32.xlu0 %v212, 30
      %v570 = vpop.permute.xlu0 %569
      %571 = vrot.lane.b32.xlu0 %v213, 30
      %v572 = vpop.permute.xlu0 %571
      %573 = vrot.lane.b32.xlu0 %v214, 30
      %v574 = vpop.permute.xlu0 %573
      %575 = vrot.lane.b32.xlu0 %v215, 30
      %v576 = vpop.permute.xlu0 %575
      %577 = vrot.lane.b32.xlu0 %v216, 30
      %v578 = vpop.permute.xlu0 %577
      %579 = vrot.lane.b32.xlu0 %v217, 30
      %v580 = vpop.permute.xlu0 %579
      %581 = vrot.lane.b32.xlu0 %v218, 30
      %v582 = vpop.permute.xlu0 %581
      %583 = vrot.lane.b32.xlu0 %v219, 30
      %v584 = vpop.permute.xlu0 %583
      %585 = vrot.lane.b32.xlu0 %v220, 30
      %v586 = vpop.permute.xlu0 %585
      %587 = vrot.lane.b32.xlu0 %v221, 30
      %v588 = vpop.permute.xlu0 %587
      %589 = vrot.lane.b32.xlu0 %v222, 30
      %v590 = vpop.permute.xlu0 %589
      %591 = vrot.lane.b32.xlu0 %v223, 30
      %v592 = vpop.permute.xlu0 %591
      %593 = vrot.lane.b32.xlu0 %v224, 30
      %v594 = vpop.permute.xlu0 %593
      %595 = vrot.lane.b32.xlu0 %v225, 30
      %v596 = vpop.permute.xlu0 %595
      %597 = vrot.lane.b32.xlu0 %v226, 30
      %v598 = vpop.permute.xlu0 %597
      %599 = vrot.lane.b32.xlu0 %v283, 30
      %v600 = vpop.permute.xlu0 %599
      %601 = vrot.lane.b32.xlu0 %v284, 30
      %v602 = vpop.permute.xlu0 %601
      %633 = vrot.lane.b32.xlu0 %v229, 40
      %v634 = vpop.permute.xlu0 %633
      %635 = vrot.lane.b32.xlu0 %v230, 40
      %v636 = vpop.permute.xlu0 %635
      %637 = vrot.lane.b32.xlu0 %v231, 40
      %v638 = vpop.permute.xlu0 %637
      %639 = vrot.lane.b32.xlu0 %v232, 40
      %v640 = vpop.permute.xlu0 %639
      %641 = vrot.lane.b32.xlu0 %v233, 40
      %v642 = vpop.permute.xlu0 %641
      %643 = vrot.lane.b32.xlu0 %v234, 40
      %v644 = vpop.permute.xlu0 %643
      %645 = vrot.lane.b32.xlu0 %v235, 40
      %v646 = vpop.permute.xlu0 %645
      %647 = vrot.lane.b32.xlu0 %v236, 40
      %v648 = vpop.permute.xlu0 %647
      %649 = vrot.lane.b32.xlu0 %v237, 40
      %v650 = vpop.permute.xlu0 %649
      %651 = vrot.lane.b32.xlu0 %v238, 40
      %v652 = vpop.permute.xlu0 %651
      %653 = vrot.lane.b32.xlu0 %v239, 40
      %v654 = vpop.permute.xlu0 %653
      %655 = vrot.lane.b32.xlu0 %v240, 40
      %v656 = vpop.permute.xlu0 %655
      %657 = vrot.lane.b32.xlu0 %v241, 40
      %v658 = vpop.permute.xlu0 %657
      %659 = vrot.lane.b32.xlu0 %v242, 40
      %v660 = vpop.permute.xlu0 %659
      %661 = vrot.lane.b32.xlu0 %v243, 40
      %v662 = vpop.permute.xlu0 %661
      %663 = vrot.lane.b32.xlu0 %v244, 40
      %v664 = vpop.permute.xlu0 %663
      %665 = vrot.lane.b32.xlu0 %v245, 40
      %v666 = vpop.permute.xlu0 %665
      %667 = vrot.lane.b32.xlu0 %v246, 40
      %v668 = vpop.permute.xlu0 %667
      %669 = vrot.lane.b32.xlu0 %v247, 40
      %v670 = vpop.permute.xlu0 %669
      %671 = vrot.lane.b32.xlu0 %v248, 40
      %v672 = vpop.permute.xlu0 %671
      %673 = vrot.lane.b32.xlu0 %v249, 40
      %v674 = vpop.permute.xlu0 %673
      %675 = vrot.lane.b32.xlu0 %v250, 40
      %v676 = vpop.permute.xlu0 %675
      %677 = vrot.lane.b32.xlu0 %v251, 40
      %v678 = vpop.permute.xlu0 %677
      %679 = vrot.lane.b32.xlu0 %v252, 40
      %v680 = vpop.permute.xlu0 %679
      %681 = vrot.lane.b32.xlu0 %v253, 40
      %v682 = vpop.permute.xlu0 %681
      %683 = vrot.lane.b32.xlu0 %v254, 40
      %v684 = vpop.permute.xlu0 %683
      %685 = vrot.lane.b32.xlu0 %v285, 40
      %v686 = vpop.permute.xlu0 %685
      %687 = vrot.lane.b32.xlu0 %v286, 40
      %v688 = vpop.permute.xlu0 %687
      %719 = vrot.lane.b32.xlu0 %v257, 50
      %v720 = vpop.permute.xlu0 %719
      %721 = vrot.lane.b32.xlu0 %v258, 50
      %v722 = vpop.permute.xlu0 %721
      %723 = vrot.lane.b32.xlu0 %v259, 50
      %v724 = vpop.permute.xlu0 %723
      %725 = vrot.lane.b32.xlu0 %v260, 50
      %v726 = vpop.permute.xlu0 %725
      %727 = vrot.lane.b32.xlu0 %v261, 50
      %v728 = vpop.permute.xlu0 %727
      %729 = vrot.lane.b32.xlu0 %v262, 50
      %v730 = vpop.permute.xlu0 %729
      %731 = vrot.lane.b32.xlu0 %v263, 50
      %v732 = vpop.permute.xlu0 %731
      %733 = vrot.lane.b32.xlu0 %v264, 50
      %v734 = vpop.permute.xlu0 %733
      %735 = vrot.lane.b32.xlu0 %v265, 50
      %v736 = vpop.permute.xlu0 %735
      %737 = vrot.lane.b32.xlu0 %v266, 50
      %v738 = vpop.permute.xlu0 %737
      %739 = vrot.lane.b32.xlu0 %v267, 50
      %v740 = vpop.permute.xlu0 %739
      %741 = vrot.lane.b32.xlu0 %v268, 50
      %v742 = vpop.permute.xlu0 %741
      %743 = vrot.lane.b32.xlu0 %v269, 50
      %v744 = vpop.permute.xlu0 %743
      %745 = vrot.lane.b32.xlu0 %v270, 50
      %v746 = vpop.permute.xlu0 %745
      %747 = vrot.lane.b32.xlu0 %v271, 50
      %v748 = vpop.permute.xlu0 %747
      %749 = vrot.lane.b32.xlu0 %v272, 50
      %v750 = vpop.permute.xlu0 %749
      %751 = vrot.lane.b32.xlu0 %v273, 50
      %v752 = vpop.permute.xlu0 %751
      %753 = vrot.lane.b32.xlu0 %v274, 50
      %v754 = vpop.permute.xlu0 %753
      %755 = vrot.lane.b32.xlu0 %v275, 50
      %v756 = vpop.permute.xlu0 %755
      %757 = vrot.lane.b32.xlu0 %v276, 50
      %v758 = vpop.permute.xlu0 %757
      %759 = vrot.lane.b32.xlu0 %v277, 50
      %v760 = vpop.permute.xlu0 %759
      %761 = vrot.lane.b32.xlu0 %v278, 50
      %v762 = vpop.permute.xlu0 %761
      %763 = vrot.lane.b32.xlu0 %v279, 50
      %v764 = vpop.permute.xlu0 %763
      %765 = vrot.lane.b32.xlu0 %v280, 50
      %v766 = vpop.permute.xlu0 %765
      %767 = vrot.lane.b32.xlu0 %v281, 50
      %v768 = vpop.permute.xlu0 %767
      %769 = vrot.lane.b32.xlu0 %v282, 50
      %v770 = vpop.permute.xlu0 %769
      %771 = vrot.lane.b32.xlu0 %v287, 50
      %v772 = vpop.permute.xlu0 %771
      %773 = vrot.lane.b32.xlu0 %v288, 50
      %v774 = vpop.permute.xlu0 %773
      %805 = vrot.lane.b32.xlu0 %v203, 60
      %v806 = vpop.permute.xlu0 %805
      %807 = vrot.lane.b32.xlu0 %v204, 60
      %v808 = vpop.permute.xlu0 %807
      %809 = vrot.lane.b32.xlu0 %v205, 60
      %v810 = vpop.permute.xlu0 %809
      %811 = vrot.lane.b32.xlu0 %v206, 60
      %v812 = vpop.permute.xlu0 %811
      %813 = vrot.lane.b32.xlu0 %v207, 60
      %v814 = vpop.permute.xlu0 %813
      %815 = vrot.lane.b32.xlu0 %v208, 60
      %v816 = vpop.permute.xlu0 %815
      %817 = vrot.lane.b32.xlu0 %v209, 60
      %v818 = vpop.permute.xlu0 %817
      %819 = vrot.lane.b32.xlu0 %v210, 60
      %v820 = vpop.permute.xlu0 %819
      %821 = vrot.lane.b32.xlu0 %v211, 60
      %v822 = vpop.permute.xlu0 %821
      %823 = vrot.lane.b32.xlu0 %v212, 60
      %v824 = vpop.permute.xlu0 %823
      %825 = vrot.lane.b32.xlu0 %v213, 60
      %v826 = vpop.permute.xlu0 %825
      %827 = vrot.lane.b32.xlu0 %v214, 60
      %v828 = vpop.permute.xlu0 %827
      %829 = vrot.lane.b32.xlu0 %v215, 60
      %v830 = vpop.permute.xlu0 %829
      %831 = vrot.lane.b32.xlu0 %v216, 60
      %v832 = vpop.permute.xlu0 %831
      %833 = vrot.lane.b32.xlu0 %v217, 60
      %v834 = vpop.permute.xlu0 %833
      %835 = vrot.lane.b32.xlu0 %v218, 60
      %v836 = vpop.permute.xlu0 %835
      %837 = vrot.lane.b32.xlu0 %v219, 60
      %v838 = vpop.permute.xlu0 %837
      %839 = vrot.lane.b32.xlu0 %v220, 60
      %v840 = vpop.permute.xlu0 %839
      %841 = vrot.lane.b32.xlu0 %v221, 60
      %v842 = vpop.permute.xlu0 %841
      %843 = vrot.lane.b32.xlu0 %v222, 60
      %v844 = vpop.permute.xlu0 %843
      %845 = vrot.lane.b32.xlu0 %v223, 60
      %v846 = vpop.permute.xlu0 %845
      %847 = vrot.lane.b32.xlu0 %v224, 60
      %v848 = vpop.permute.xlu0 %847
      %849 = vrot.lane.b32.xlu0 %v225, 60
      %v850 = vpop.permute.xlu0 %849
      %851 = vrot.lane.b32.xlu0 %v226, 60
      %v852 = vpop.permute.xlu0 %851
      %853 = vrot.lane.b32.xlu0 %v283, 60
      %v854 = vpop.permute.xlu0 %853
      %855 = vrot.lane.b32.xlu0 %v284, 60
      %v856 = vpop.permute.xlu0 %855
      %857 = vrot.lane.b32.xlu0 %v289, 60
      %v858 = vpop.permute.xlu0 %857
      %859 = vrot.lane.b32.xlu0 %v290, 60
      %v860 = vpop.permute.xlu0 %859
      %891 = vrot.lane.b32.xlu0 %v231, 70
      %v892 = vpop.permute.xlu0 %891
      %893 = vrot.lane.b32.xlu0 %v232, 70
      %v894 = vpop.permute.xlu0 %893
      %895 = vrot.lane.b32.xlu0 %v233, 70
      %v896 = vpop.permute.xlu0 %895
      %897 = vrot.lane.b32.xlu0 %v234, 70
      %v898 = vpop.permute.xlu0 %897
      %899 = vrot.lane.b32.xlu0 %v235, 70
      %v900 = vpop.permute.xlu0 %899
      %901 = vrot.lane.b32.xlu0 %v236, 70
      %v902 = vpop.permute.xlu0 %901
      %903 = vrot.lane.b32.xlu0 %v237, 70
      %v904 = vpop.permute.xlu0 %903
      %905 = vrot.lane.b32.xlu0 %v238, 70
      %v906 = vpop.permute.xlu0 %905
      %907 = vrot.lane.b32.xlu0 %v239, 70
      %v908 = vpop.permute.xlu0 %907
      %909 = vrot.lane.b32.xlu0 %v240, 70
      %v910 = vpop.permute.xlu0 %909
      %911 = vrot.lane.b32.xlu0 %v241, 70
      %v912 = vpop.permute.xlu0 %911
      %913 = vrot.lane.b32.xlu0 %v242, 70
      %v914 = vpop.permute.xlu0 %913
      %915 = vrot.lane.b32.xlu0 %v243, 70
      %v916 = vpop.permute.xlu0 %915
      %917 = vrot.lane.b32.xlu0 %v244, 70
      %v918 = vpop.permute.xlu0 %917
      %919 = vrot.lane.b32.xlu0 %v245, 70
      %v920 = vpop.permute.xlu0 %919
      %921 = vrot.lane.b32.xlu0 %v246, 70
      %v922 = vpop.permute.xlu0 %921
      %923 = vrot.lane.b32.xlu0 %v247, 70
      %v924 = vpop.permute.xlu0 %923
      %925 = vrot.lane.b32.xlu0 %v248, 70
      %v926 = vpop.permute.xlu0 %925
      %927 = vrot.lane.b32.xlu0 %v249, 70
      %v928 = vpop.permute.xlu0 %927
      %929 = vrot.lane.b32.xlu0 %v250, 70
      %v930 = vpop.permute.xlu0 %929
      %931 = vrot.lane.b32.xlu0 %v251, 70
      %v932 = vpop.permute.xlu0 %931
      %933 = vrot.lane.b32.xlu0 %v252, 70
      %v934 = vpop.permute.xlu0 %933
      %935 = vrot.lane.b32.xlu0 %v253, 70
      %v936 = vpop.permute.xlu0 %935
      %937 = vrot.lane.b32.xlu0 %v254, 70
      %v938 = vpop.permute.xlu0 %937
      %939 = vrot.lane.b32.xlu0 %v285, 70
      %v940 = vpop.permute.xlu0 %939
      %941 = vrot.lane.b32.xlu0 %v286, 70
      %v942 = vpop.permute.xlu0 %941
      %943 = vrot.lane.b32.xlu0 %v291, 70
      %v944 = vpop.permute.xlu0 %943
      %945 = vrot.lane.b32.xlu0 %v292, 70
      %v946 = vpop.permute.xlu0 %945
      %977 = vrot.lane.b32.xlu0 %v259, 80
      %v978 = vpop.permute.xlu0 %977
      %979 = vrot.lane.b32.xlu0 %v260, 80
      %v980 = vpop.permute.xlu0 %979
      %981 = vrot.lane.b32.xlu0 %v261, 80
      %v982 = vpop.permute.xlu0 %981
      %983 = vrot.lane.b32.xlu0 %v262, 80
      %v984 = vpop.permute.xlu0 %983
      %985 = vrot.lane.b32.xlu0 %v263, 80
      %v986 = vpop.permute.xlu0 %985
      %987 = vrot.lane.b32.xlu0 %v264, 80
      %v988 = vpop.permute.xlu0 %987
      %989 = vrot.lane.b32.xlu0 %v265, 80
      %v990 = vpop.permute.xlu0 %989
      %991 = vrot.lane.b32.xlu0 %v266, 80
      %v992 = vpop.permute.xlu0 %991
      %993 = vrot.lane.b32.xlu0 %v267, 80
      %v994 = vpop.permute.xlu0 %993
      %995 = vrot.lane.b32.xlu0 %v268, 80
      %v996 = vpop.permute.xlu0 %995
      %997 = vrot.lane.b32.xlu0 %v269, 80
      %v998 = vpop.permute.xlu0 %997
      %999 = vrot.lane.b32.xlu0 %v270, 80
      %v1000 = vpop.permute.xlu0 %999
      %1001 = vrot.lane.b32.xlu0 %v271, 80
      %v1002 = vpop.permute.xlu0 %1001
      %1003 = vrot.lane.b32.xlu0 %v272, 80
      %v1004 = vpop.permute.xlu0 %1003
      %1005 = vrot.lane.b32.xlu0 %v273, 80
      %v1006 = vpop.permute.xlu0 %1005
      %1007 = vrot.lane.b32.xlu0 %v274, 80
      %v1008 = vpop.permute.xlu0 %1007
      %1009 = vrot.lane.b32.xlu0 %v275, 80
      %v1010 = vpop.permute.xlu0 %1009
      %1011 = vrot.lane.b32.xlu0 %v276, 80
      %v1012 = vpop.permute.xlu0 %1011
      %1013 = vrot.lane.b32.xlu0 %v277, 80
      %v1014 = vpop.permute.xlu0 %1013
      %1015 = vrot.lane.b32.xlu0 %v278, 80
      %v1016 = vpop.permute.xlu0 %1015
      %1017 = vrot.lane.b32.xlu0 %v279, 80
      %v1018 = vpop.permute.xlu0 %1017
      %1019 = vrot.lane.b32.xlu0 %v280, 80
      %v1020 = vpop.permute.xlu0 %1019
      %1021 = vrot.lane.b32.xlu0 %v281, 80
      %v1022 = vpop.permute.xlu0 %1021
      %1023 = vrot.lane.b32.xlu0 %v282, 80
      %v1024 = vpop.permute.xlu0 %1023
      %1025 = vrot.lane.b32.xlu0 %v287, 80
      %v1026 = vpop.permute.xlu0 %1025
      %1027 = vrot.lane.b32.xlu0 %v288, 80
      %v1028 = vpop.permute.xlu0 %1027
      %1029 = vrot.lane.b32.xlu0 %v293, 80
      %v1030 = vpop.permute.xlu0 %1029
      %1031 = vrot.lane.b32.xlu0 %v294, 80
      %v1032 = vpop.permute.xlu0 %1031
      %vm1061 = vcmask 80896
      %v1062 = vsel %vm1061, %v199, %v324
      %v1063 = vsel %vm1061, %v200, %v326
      %v1064 = vsel %vm1061, %v201, %v328
      %v1065 = vsel %vm1061, %v202, %v330
      %v1066 = vsel %vm1061, %v203, %v332
      %v1067 = vsel %vm1061, %v204, %v334
      %v1068 = vsel %vm1061, %v205, %v336
      %v1069 = vsel %vm1061, %v206, %v338
      %v1070 = vsel %vm1061, %v207, %v340
      %v1071 = vsel %vm1061, %v208, %v342
      %v1072 = vsel %vm1061, %v209, %v344
      %v1073 = vsel %vm1061, %v210, %v346
      %v1074 = vsel %vm1061, %v211, %v348
      %v1075 = vsel %vm1061, %v212, %v350
      %v1076 = vsel %vm1061, %v213, %v352
      %v1077 = vsel %vm1061, %v214, %v354
      %v1078 = vsel %vm1061, %v215, %v356
      %v1079 = vsel %vm1061, %v216, %v358
      %v1080 = vsel %vm1061, %v217, %v360
      %v1081 = vsel %vm1061, %v218, %v362
      %v1082 = vsel %vm1061, %v219, %v364
      %v1083 = vsel %vm1061, %v220, %v366
      %v1084 = vsel %vm1061, %v221, %v368
      %v1085 = vsel %vm1061, %v222, %v370
      %v1086 = vsel %vm1061, %v223, %v372
      %v1087 = vsel %vm1061, %v224, %v374
      %v1088 = vsel %vm1061, %v225, %v376
      %v1089 = vsel %vm1061, %v226, %v378
      %vm1090 = vcmask 162816
      %v1091 = vsel %vm1090, %v1062, %v436
      %v1092 = vsel %vm1090, %v1063, %v438
      %v1093 = vsel %vm1090, %v1064, %v440
      %v1094 = vsel %vm1090, %v1065, %v442
      %v1095 = vsel %vm1090, %v1066, %v444
      %v1096 = vsel %vm1090, %v1067, %v446
      %v1097 = vsel %vm1090, %v1068, %v448
      %v1098 = vsel %vm1090, %v1069, %v450
      %v1099 = vsel %vm1090, %v1070, %v452
      %v1100 = vsel %vm1090, %v1071, %v454
      %v1101 = vsel %vm1090, %v1072, %v456
      %v1102 = vsel %vm1090, %v1073, %v458
      %v1103 = vsel %vm1090, %v1074, %v460
      %v1104 = vsel %vm1090, %v1075, %v462
      %v1105 = vsel %vm1090, %v1076, %v464
      %v1106 = vsel %vm1090, %v1077, %v466
      %v1107 = vsel %vm1090, %v1078, %v468
      %v1108 = vsel %vm1090, %v1079, %v470
      %v1109 = vsel %vm1090, %v1080, %v472
      %v1110 = vsel %vm1090, %v1081, %v474
      %v1111 = vsel %vm1090, %v1082, %v476
      %v1112 = vsel %vm1090, %v1083, %v478
      %v1113 = vsel %vm1090, %v1084, %v480
      %v1114 = vsel %vm1090, %v1085, %v482
      %v1115 = vsel %vm1090, %v1086, %v484
      %v1116 = vsel %vm1090, %v1087, %v486
      %v1117 = vsel %vm1090, %v1088, %v488
      %v1118 = vsel %vm1090, %v1089, %v490
      %vm1119 = vcmask 244736
      %v1120 = vsel %vm1119, %v1091, %v548
      %v1121 = vsel %vm1119, %v1092, %v550
      %v1122 = vsel %vm1119, %v1093, %v552
      %v1123 = vsel %vm1119, %v1094, %v554
      %v1124 = vsel %vm1119, %v1095, %v556
      %v1125 = vsel %vm1119, %v1096, %v558
      %v1126 = vsel %vm1119, %v1097, %v560
      %v1127 = vsel %vm1119, %v1098, %v562
      %v1128 = vsel %vm1119, %v1099, %v564
      %v1129 = vsel %vm1119, %v1100, %v566
      %v1130 = vsel %vm1119, %v1101, %v568
      %v1131 = vsel %vm1119, %v1102, %v570
      %v1132 = vsel %vm1119, %v1103, %v572
      %v1133 = vsel %vm1119, %v1104, %v574
      %v1134 = vsel %vm1119, %v1105, %v576
      %v1135 = vsel %vm1119, %v1106, %v578
      %v1136 = vsel %vm1119, %v1107, %v580
      %v1137 = vsel %vm1119, %v1108, %v582
      %v1138 = vsel %vm1119, %v1109, %v584
      %v1139 = vsel %vm1119, %v1110, %v586
      %v1140 = vsel %vm1119, %v1111, %v588
      %v1141 = vsel %vm1119, %v1112, %v590
      %v1142 = vsel %vm1119, %v1113, %v592
      %v1143 = vsel %vm1119, %v1114, %v594
      %v1144 = vsel %vm1119, %v1115, %v596
      %v1145 = vsel %vm1119, %v1116, %v598
      %v1146 = vsel %vm1119, %v1117, %v600
      %v1147 = vsel %vm1119, %v1118, %v602
      %vm1148 = vcmask 326656
      %v1149 = vsel %vm1148, %v1120, %v634
      %v1150 = vsel %vm1148, %v1121, %v636
      %v1151 = vsel %vm1148, %v1122, %v638
      %v1152 = vsel %vm1148, %v1123, %v640
      %v1153 = vsel %vm1148, %v1124, %v642
      %v1154 = vsel %vm1148, %v1125, %v644
      %v1155 = vsel %vm1148, %v1126, %v646
      %v1156 = vsel %vm1148, %v1127, %v648
      %v1157 = vsel %vm1148, %v1128, %v650
      %v1158 = vsel %vm1148, %v1129, %v652
      %v1159 = vsel %vm1148, %v1130, %v654
      %v1160 = vsel %vm1148, %v1131, %v656
      %v1161 = vsel %vm1148, %v1132, %v658
      %v1162 = vsel %vm1148, %v1133, %v660
      %v1163 = vsel %vm1148, %v1134, %v662
      %v1164 = vsel %vm1148, %v1135, %v664
      %v1165 = vsel %vm1148, %v1136, %v666
      %v1166 = vsel %vm1148, %v1137, %v668
      %v1167 = vsel %vm1148, %v1138, %v670
      %v1168 = vsel %vm1148, %v1139, %v672
      %v1169 = vsel %vm1148, %v1140, %v674
      %v1170 = vsel %vm1148, %v1141, %v676
      %v1171 = vsel %vm1148, %v1142, %v678
      %v1172 = vsel %vm1148, %v1143, %v680
      %v1173 = vsel %vm1148, %v1144, %v682
      %v1174 = vsel %vm1148, %v1145, %v684
      %v1175 = vsel %vm1148, %v1146, %v686
      %v1176 = vsel %vm1148, %v1147, %v688
      %vm1177 = vcmask 408576
      %v1178 = vsel %vm1177, %v1149, %v720
      %v1179 = vsel %vm1177, %v1150, %v722
      %v1180 = vsel %vm1177, %v1151, %v724
      %v1181 = vsel %vm1177, %v1152, %v726
      %v1182 = vsel %vm1177, %v1153, %v728
      %v1183 = vsel %vm1177, %v1154, %v730
      %v1184 = vsel %vm1177, %v1155, %v732
      %v1185 = vsel %vm1177, %v1156, %v734
      %v1186 = vsel %vm1177, %v1157, %v736
      %v1187 = vsel %vm1177, %v1158, %v738
      %v1188 = vsel %vm1177, %v1159, %v740
      %v1189 = vsel %vm1177, %v1160, %v742
      %v1190 = vsel %vm1177, %v1161, %v744
      %v1191 = vsel %vm1177, %v1162, %v746
      %v1192 = vsel %vm1177, %v1163, %v748
      %v1193 = vsel %vm1177, %v1164, %v750
      %v1194 = vsel %vm1177, %v1165, %v752
      %v1195 = vsel %vm1177, %v1166, %v754
      %v1196 = vsel %vm1177, %v1167, %v756
      %v1197 = vsel %vm1177, %v1168, %v758
      %v1198 = vsel %vm1177, %v1169, %v760
      %v1199 = vsel %vm1177, %v1170, %v762
      %v1200 = vsel %vm1177, %v1171, %v764
      %v1201 = vsel %vm1177, %v1172, %v766
      %v1202 = vsel %vm1177, %v1173, %v768
      %v1203 = vsel %vm1177, %v1174, %v770
      %v1204 = vsel %vm1177, %v1175, %v772
      %v1205 = vsel %vm1177, %v1176, %v774
      %vm1206 = vcmask 490496
      %v1207 = vsel %vm1206, %v1178, %v806
      %v1208 = vsel %vm1206, %v1179, %v808
      %v1209 = vsel %vm1206, %v1180, %v810
      %v1210 = vsel %vm1206, %v1181, %v812
      %v1211 = vsel %vm1206, %v1182, %v814
      %v1212 = vsel %vm1206, %v1183, %v816
      %v1213 = vsel %vm1206, %v1184, %v818
      %v1214 = vsel %vm1206, %v1185, %v820
      %v1215 = vsel %vm1206, %v1186, %v822
      %v1216 = vsel %vm1206, %v1187, %v824
      %v1217 = vsel %vm1206, %v1188, %v826
      %v1218 = vsel %vm1206, %v1189, %v828
      %v1219 = vsel %vm1206, %v1190, %v830
      %v1220 = vsel %vm1206, %v1191, %v832
      %v1221 = vsel %vm1206, %v1192, %v834
      %v1222 = vsel %vm1206, %v1193, %v836
      %v1223 = vsel %vm1206, %v1194, %v838
      %v1224 = vsel %vm1206, %v1195, %v840
      %v1225 = vsel %vm1206, %v1196, %v842
      %v1226 = vsel %vm1206, %v1197, %v844
      %v1227 = vsel %vm1206, %v1198, %v846
      %v1228 = vsel %vm1206, %v1199, %v848
      %v1229 = vsel %vm1206, %v1200, %v850
      %v1230 = vsel %vm1206, %v1201, %v852
      %v1231 = vsel %vm1206, %v1202, %v854
      %v1232 = vsel %vm1206, %v1203, %v856
      %v1233 = vsel %vm1206, %v1204, %v858
      %v1234 = vsel %vm1206, %v1205, %v860
      %vm1235 = vcmask 572416
      %v1236 = vsel %vm1235, %v1207, %v892
      %v1237 = vsel %vm1235, %v1208, %v894
      %v1238 = vsel %vm1235, %v1209, %v896
      %v1239 = vsel %vm1235, %v1210, %v898
      %v1240 = vsel %vm1235, %v1211, %v900
      %v1241 = vsel %vm1235, %v1212, %v902
      %v1242 = vsel %vm1235, %v1213, %v904
      %v1243 = vsel %vm1235, %v1214, %v906
      %v1244 = vsel %vm1235, %v1215, %v908
      %v1245 = vsel %vm1235, %v1216, %v910
      %v1246 = vsel %vm1235, %v1217, %v912
      %v1247 = vsel %vm1235, %v1218, %v914
      %v1248 = vsel %vm1235, %v1219, %v916
      %v1249 = vsel %vm1235, %v1220, %v918
      %v1250 = vsel %vm1235, %v1221, %v920
      %v1251 = vsel %vm1235, %v1222, %v922
      %v1252 = vsel %vm1235, %v1223, %v924
      %v1253 = vsel %vm1235, %v1224, %v926
      %v1254 = vsel %vm1235, %v1225, %v928
      %v1255 = vsel %vm1235, %v1226, %v930
      %v1256 = vsel %vm1235, %v1227, %v932
      %v1257 = vsel %vm1235, %v1228, %v934
      %v1258 = vsel %vm1235, %v1229, %v936
      %v1259 = vsel %vm1235, %v1230, %v938
      %v1260 = vsel %vm1235, %v1231, %v940
      %v1261 = vsel %vm1235, %v1232, %v942
      %v1262 = vsel %vm1235, %v1233, %v944
      %v1263 = vsel %vm1235, %v1234, %v946
      %vm1264 = vcmask 654336
      %v1265 = vsel %vm1264, %v1236, %v978
      %v1266 = vsel %vm1264, %v1237, %v980
      %v1267 = vsel %vm1264, %v1238, %v982
      %v1268 = vsel %vm1264, %v1239, %v984
      %v1269 = vsel %vm1264, %v1240, %v986
      %v1270 = vsel %vm1264, %v1241, %v988
      %v1271 = vsel %vm1264, %v1242, %v990
      %v1272 = vsel %vm1264, %v1243, %v992
      %v1273 = vsel %vm1264, %v1244, %v994
      %v1274 = vsel %vm1264, %v1245, %v996
      %v1275 = vsel %vm1264, %v1246, %v998
      %v1276 = vsel %vm1264, %v1247, %v1000
      %v1277 = vsel %vm1264, %v1248, %v1002
      %v1278 = vsel %vm1264, %v1249, %v1004
      %v1279 = vsel %vm1264, %v1250, %v1006
      %v1280 = vsel %vm1264, %v1251, %v1008
      %v1281 = vsel %vm1264, %v1252, %v1010
      %v1282 = vsel %vm1264, %v1253, %v1012
      %v1283 = vsel %vm1264, %v1254, %v1014
      %v1284 = vsel %vm1264, %v1255, %v1016
      %v1285 = vsel %vm1264, %v1256, %v1018
      %v1286 = vsel %vm1264, %v1257, %v1020
      %v1287 = vsel %vm1264, %v1258, %v1022
      %v1288 = vsel %vm1264, %v1259, %v1024
      %v1289 = vsel %vm1264, %v1260, %v1026
      %v1290 = vsel %vm1264, %v1261, %v1028
      %v1291 = vsel %vm1264, %v1262, %v1030
      %v1292 = vsel %vm1264, %v1263, %v1032
      %v1293 = vld [vmem:[%s1] sm:$0xff]
      %v1294 = vld [vmem:[%s1 + $0x8] sm:$0x3]
      %v1295 = vld [vmem:[%s2] sm:$0xff]
      %v1296 = vld [vmem:[%s2 + $0x8] sm:$0x3]
      %1298 = vset.pattern.permute.xlu0 0
      %1299 = vperm.xlu0 %1298, %v1295
      %v1300 = vpop.permute.xlu0 %1299
      %1303 = vset.pattern.permute.xlu0 0
      %1304 = vperm.xlu0 %1303, %v1296
      %v1305 = vpop.permute.xlu0 %1304
      %vm1307 = vcmask 736256
      %v1309 = vsel %vm1307, %v1293, 0
      %v1312 = vsel %vm1307, %v1294, 0
      %v1315 = vsel %vm1307, %v1265, 0
      %v1318 = vsel %vm1307, %v1266, 0
      %v1321 = vsel %vm1307, %v1267, 0
      %v1324 = vsel %vm1307, %v1268, 0
      %v1327 = vsel %vm1307, %v1269, 0
      %v1330 = vsel %vm1307, %v1270, 0
      %v1333 = vsel %vm1307, %v1271, 0
      %v1336 = vsel %vm1307, %v1272, 0
      %v1339 = vsel %vm1307, %v1273, 0
      %v1342 = vsel %vm1307, %v1274, 0
      %v1345 = vsel %vm1307, %v1275, 0
      %v1348 = vsel %vm1307, %v1276, 0
      %v1351 = vsel %vm1307, %v1277, 0
      %v1354 = vsel %vm1307, %v1278, 0
      %v1357 = vsel %vm1307, %v1279, 0
      %v1360 = vsel %vm1307, %v1280, 0
      %v1363 = vsel %vm1307, %v1281, 0
      %v1366 = vsel %vm1307, %v1282, 0
      %v1369 = vsel %vm1307, %v1283, 0
      %v1372 = vsel %vm1307, %v1284, 0
      %v1375 = vsel %vm1307, %v1285, 0
      %v1378 = vsel %vm1307, %v1286, 0
      %v1381 = vsel %vm1307, %v1287, 0
      %v1384 = vsel %vm1307, %v1288, 0
      %v1387 = vsel %vm1307, %v1289, 0
      %v1390 = vsel %vm1307, %v1290, 0
      %v1393 = vsel %vm1307, %v1291, 0
      %v1396 = vsel %vm1307, %v1292, 0
      %1398 = vmatprep.subr.mxu0 0.0
      %1399 = vmatpush1.xpose.msra.mxu0 %v1315
      %1400 = vmatprep.subr.mxu0 0.0
      %1401 = vmatpush1.xpose.msra.mxu0 %v1318
      %1402 = vmatprep.subr.mxu0 0.0
      %1403 = vmatpush1.xpose.msra.mxu0 %v1321
      %1404 = vmatprep.subr.mxu0 0.0
      %1405 = vmatpush1.xpose.msra.mxu0 %v1324
      %1406 = vmatprep.subr.mxu0 0.0
      %1407 = vmatpush1.xpose.msra.mxu0 %v1327
      %1408 = vmatprep.subr.mxu0 0.0
      %1409 = vmatpush1.xpose.msra.mxu0 %v1330
      %1410 = vmatprep.subr.mxu0 0.0
      %1411 = vmatpush1.xpose.msra.mxu0 %v1333
      %1412 = vmatprep.subr.mxu0 0.0
      %1413 = vmatpush1.xpose.msra.mxu0 %v1336
      %1414 = vmatprep.subr.mxu0 0.0
      %1415 = vmatpush1.xpose.msra.mxu0 %v1339
      %1416 = vmatprep.subr.mxu0 0.0
      %1417 = vmatpush1.xpose.msra.mxu0 %v1342
      %1418 = vmatprep.subr.mxu0 0.0
      %1419 = vmatpush1.xpose.msra.mxu0 %v1345
      %1420 = vmatprep.subr.mxu0 0.0
      %1421 = vmatpush1.xpose.msra.mxu0 %v1348
      %1422 = vmatprep.subr.mxu0 0.0
      %1423 = vmatpush1.xpose.msra.mxu0 %v1351
      %1424 = vmatprep.subr.mxu0 0.0
      %1425 = vmatpush1.xpose.msra.mxu0 %v1354
      %1426 = vmatprep.subr.mxu0 0.0
      %1427 = vmatpush1.xpose.msra.mxu0 %v1357
      %1428 = vmatprep.subr.mxu0 0.0
      %1429 = vmatpush1.xpose.msra.mxu0 %v1360
      %1430 = vmatprep.subr.mxu0 0.0
      %1431 = vmatpush1.xpose.msra.mxu0 %v1363
      %1432 = vmatprep.subr.mxu0 0.0
      %1433 = vmatpush1.xpose.msra.mxu0 %v1366
      %1434 = vmatprep.subr.mxu0 0.0
      %1435 = vmatpush1.xpose.msra.mxu0 %v1369
      %1436 = vmatprep.subr.mxu0 0.0
      %1437 = vmatpush1.xpose.msra.mxu0 %v1372
      %1438 = vmatprep.subr.mxu0 0.0
      %1439 = vmatpush1.xpose.msra.mxu0 %v1375
      %1440 = vmatprep.subr.mxu0 0.0
      %1441 = vmatpush1.xpose.msra.mxu0 %v1378
      %1442 = vmatprep.subr.mxu0 0.0
      %1443 = vmatpush1.xpose.msra.mxu0 %v1381
      %1444 = vmatprep.subr.mxu0 0.0
      %1445 = vmatpush1.xpose.msra.mxu0 %v1384
      %1446 = vmatprep.subr.mxu0 0.0
      %1447 = vmatpush1.xpose.msra.mxu0 %v1387
      %1448 = vmatprep.subr.mxu0 0.0
      %1449 = vmatpush1.xpose.msra.mxu0 %v1390
      %1450 = vmatprep.subr.mxu0 0.0
      %1451 = vmatpush1.xpose.msra.mxu0 %v1393
      %1452 = vmatprep.subr.mxu0 0.0
      %1453 = vmatpush1.xpose.msra.mxu0 %v1396
      %1454 = vmatprep.subr.mxu0 0.0
      %1455 = vmatpush1.xpose.msra.mxu0 0.0
      %1456 = vmatprep.subr.mxu0 0.0
      %1457 = vmatpush1.xpose.msra.mxu0 0.0
      %1458 = vmatprep.subr.mxu0 0.0
      %1459 = vmatpush1.xpose.msra.mxu0 0.0
      %1460 = vmatprep.subr.mxu0 0.0
      %1461 = vmatpush1.xpose.msra.mxu0 0.0
      %1462 = vmatprep.mubr.f32.mxu0 0.0
      %1463 = vmatmul.mubr.f32.gmra.mrb[0].mxu0 %v1309
      %v1464 = vpop.f32.mrb[0].mxu0
      %v1465 = vadd.f32 %v1300, %v1464
      %v1466 = vpop.f32.mrb[0].mxu0
      %v1467 = vadd.f32 %v1300, %v1466
      %1468 = vmatprep.mubr.f32.mxu0 0.0
      %1469 = vmatmul.mubr.f32.gmra.mrb[0].mxu0 %v1312
      %v1470 = vpop.f32.mrb[0].mxu0
      %v1471 = vadd.f32 %v1305, %v1470
      %v1472 = vpop.f32.mrb[0].mxu0
      %v1473 = vadd.f32 %v1305, %v1472
      %1474 = vdwg.mxu0
      %v1475 = vmax.f32 %v1465, 0.0
      %v1476 = vmax.f32 %v1467, 0.0
      %v1477 = vmax.f32 %v1471, 0.0
      %v1478 = vmax.f32 %v1473, 0.0
      %1479 = vst [vmem:[%s198] sm:$0xff] %v1475
      %vm1480 = vcmask 785408
      %1481 = vst.msk [vmem:[%s198 + $0x8] sm:$0xff] %vm1480, %v1476
      %1482 = vst [vmem:[%s198 + $0x10] sm:$0x3] %v1477
      %vm1483 = vcmask 779264
      %1484 = vst.msk [vmem:[%s198 + $0x18] sm:$0x3] %vm1483, %v1478
      %p1485 = scmp.lt.s32.totalorder %s16, 1
      %s1486 = scalar_select %p1485, %s16, 1
      %s1487 = smul.addr %s1486, 4
      %s1488 = smul.addr %s1487, 8
      %s1489 = scalar_lea.vmem %s4, %s1488
      // Predicated region
      $region37: #{tpu_custom_call.1} parent=35 // pred_check
        %p1490 = pneg %p123
      $region38: #{tpu_custom_call.1} parent=35 // pred_check_branch
        %1492 = sbr.rel (%p1490) target = $region40
      $region39: #{tpu_custom_call.1} parent=35 // pred_region
        _
      $region40: #{tpu_custom_call.1} parent=35 // pred_fallthru
        _
    $region36: #{tpu_custom_call.1} parent=5 // pred_fallthru
      _
    %p1493 = scmp.le.s32.totalorder 2, %s11
    // Predicated region
    $region41: #{tpu_custom_call.1} parent=5 // pred_check
      %p1494 = pneg %p1493
    $region42: #{tpu_custom_call.1} parent=5 // pred_check_branch
      %1496 = sbr.rel (%p1494) target = $region44
    $region43: #{tpu_custom_call.1} parent=5 // pred_region
      %s1497 = ssub.s32 %s11, 2
      // Predicated region
      $region45: #{tpu_custom_call.1} parent=43 // pred_check
        %p1498 = pneg %p129
      $region46: #{tpu_custom_call.1} parent=43 // pred_check_branch
        %1500 = sbr.rel (%p1498) target = $region48
      $region47: #{tpu_custom_call.1} parent=43 // pred_region
        %p1501 = scmp.lt.s32.totalorder %s17, 1
        %s1502 = scalar_select %p1501, %s17, 1
        %s1503 = smul.addr %s1502, 4
        %s1504 = smul.addr %s1503, 8
        %s1505 = scalar_lea.vmem %s4, %s1504
      $region48: #{tpu_custom_call.1} parent=43 // pred_fallthru
        _
    $region44: #{tpu_custom_call.1} parent=5 // pred_fallthru
      _
  $region6: #{tpu_custom_call.1} parent=0 // loop_footer
    %s15 = sadd.s32 1, %s11
  $region7: #{tpu_custom_call.1} parent=0 // loop_footer_branch
    %10 = sbr.rel target = $region3
  $region8: #{tpu_custom_call.1} parent=0 // loop_exit
    _

</llo_original>
